<compile_context>
chip_gen: v7x
topology: tpu7x:2x2x1
jax: 0.10.0
libtpu: 0.0.40
codegen_flags: <defaults>
</compile_context>

<pallas_src>
import functools

import jax
import jax.numpy as jnp
from jax.experimental import pallas as pl
from jax.experimental.pallas import tpu as pltpu


def _cdiv(a: int, b: int) -> int:
    return -(-a // b)


def _round_up(a: int, m: int) -> int:
    return _cdiv(a, m) * m


def _integer_power(base, exponent: int):
    """Exponentiation-by-squaring, unrolled at trace time (VALU multiplies only)."""
    result = jnp.ones_like(base)
    b = base
    e = exponent
    while e > 0:
        if e & 1:
            result = result * b
        e >>= 1
        if e:
            b = b * b
    return result


def _vmem_capacity_bytes() -> int:
    """Per-core VMEM capacity, with a conservative (v7x-sized) fallback."""
    try:
        cap = getattr(pltpu.get_tpu_info(), "vmem_capacity_bytes", None)
        if cap:
            return int(cap)
    except Exception:
        pass
    return 64 * 1024 * 1024


def focal_loss_kernel(x_ref, y_ref, alpha_ref, out_ref, *,
                      gamma, block_n, n_total, mxu_gather):
    i = pl.program_id(0)

    x = x_ref[...].astype(jnp.float32)            # (block_n, C) logits
    y = y_ref[...]                                # (block_n, 1) int32 labels
    bn, c = x.shape

    # Numerically-stable log-sum-exp along the class (lane) axis.
    m = jnp.max(x, axis=-1, keepdims=True)
    lse = m + jnp.log(jnp.sum(jnp.exp(x - m), axis=-1, keepdims=True))

    # Boolean one-hot of the labels (no float one-hot, no log_pt temporary).
    col = jax.lax.broadcasted_iota(jnp.int32, (bn, c), 1)
    hit = col == y                                 # (block_n, C)

    # x[i, y_i] via masked lane reduction (VPU + XLU).
    x_y = jnp.sum(jnp.where(hit, x, 0.0), axis=-1, keepdims=True)        # (bn, 1)

    if mxu_gather:
        # Small-C regime is XLU-bound: gather alpha[y_i] on the otherwise-idle
        # MXU instead of paying a fourth cross-lane reduction per row.
        # alpha_ref holds the f32 alpha column replicated across 128 lanes, so
        # the matmul output is lane-dense; hit is exactly 0/1 and the dot runs
        # at HIGHEST (f32) precision, so the gather is exact.
        w_all = jnp.dot(hit.astype(jnp.float32), alpha_ref[...],
                        preferred_element_type=jnp.float32,
                        precision=jax.lax.Precision.HIGHEST)             # (bn, 128)
        w_y = w_all[:, 0:1]
    else:
        # Wide-C regime is HBM-bound; keep the VPU masked-sum gather and the
        # compact (1, C) alpha row layout.
        w_y = jnp.sum(jnp.where(hit, alpha_ref[...], 0.0),
                      axis=-1, keepdims=True)                            # (bn, 1)

    log_pt_y = x_y - lse                           # (bn, 1), <= 0 (modulo rounding)
    pt = jnp.exp(log_pt_y)
    one_minus_pt = jnp.maximum(1.0 - pt, 0.0)      # clamp: avoid NaN in pow

    if float(gamma).is_integer() and 0 <= int(gamma) <= 16:
        focal = _integer_power(one_minus_pt, int(gamma))   # VALU only
    else:
        focal = one_minus_pt ** jnp.float32(gamma)          # EUP pow (non-int gamma)

    # Mask rows of the (possibly padded) last partial tile out of both sums.
    # NOTE: keep this select AFTER the multiplies -- select does not propagate
    # NaN/Inf from the unselected operand, so garbage padded rows are harmless.
    row = i * block_n + jax.lax.broadcasted_iota(jnp.int32, (bn, 1), 0)
    valid = row < n_total
    num = jnp.sum(jnp.where(valid, w_y * focal * log_pt_y, 0.0))
    den = jnp.sum(jnp.where(valid, w_y, 0.0))

    # Lane-dense partial-sum output block: sublane 0 = num, sublane 1 = den.
    sub = jax.lax.broadcasted_iota(jnp.int32, out_ref.shape, 1)
    out_ref[...] = jnp.where(sub == 0, num, jnp.where(sub == 1, den, 0.0))


def focal_loss(x, y, alpha=None, gamma: float = 2.0, block_n: int | None = None):
    """x: (N, C) float logits (any float dtype), y: (N,) int labels,
    alpha: (C,) class weights or None."""
    n, c = x.shape
    if alpha is None:
        alpha = jnp.ones((c,), jnp.float32)

    itemsize = jnp.dtype(x.dtype).itemsize
    # Sub-32-bit logits pack rows along sublanes: row tile must be a multiple of
    # the packed granule (8 for f32, 16 for bf16, 32 for int8/fp8).
    row_multiple = max(8, 32 // itemsize)

    # Small C -> XLU-bound -> MXU alpha gather (lane-replicated alpha column).
    # Large C -> HBM-bound -> VPU gather with the compact (1, C) alpha row.
    mxu_gather = c <= 2048

    # ---- Generation-aware VMEM budget ---------------------------------------
    # v7x has only 64 MiB VMEM per TensorCore: keep the declared budget <= 44 MiB.
    # v5e/v6e have 128 MiB physical: allow 60 MiB (well above the 16/32 MiB
    # scoped defaults, which the explicit vmem_limit_bytes overrides).
    vmem_cap = _vmem_capacity_bytes()
    budget = (44 * 1024 * 1024 if vmem_cap <= 96 * 1024 * 1024
              else 60 * 1024 * 1024)

    # Per-row VMEM cost of one grid step:
    #   * double-buffered x tile in its native dtype,
    #   * ~3 full-tile f32 temporaries (upcast / exp chain / masked select),
    #   * the boolean one-hot mask,
    #   * ~8 (block_n, 1) f32 column temporaries (m, lse, x_y, pt, focal, ...),
    #     each lane-padded to 128 lanes -> 512 B/row,
    #   * the (block_n, 128) MXU gather output when mxu_gather,
    #   * double-buffered (block_n, 1) int32 labels, lane-padded to 512 B/row
    #     per buffer (the dominant term at small C).
    per_row = (2 * c * itemsize
               + 3 * c * 4
               + c
               + 8 * 512
               + (512 if mxu_gather else 0)
               + 2 * 512)
    alpha_bytes = (2 * _round_up(c, 8) * 128 * 4) if mxu_gather else (2 * 8 * c * 4)
    fixed = alpha_bytes + 2 * 8 * 128 * 4 + (1 << 20)

    # TODO(synk): classes stay full-extent on the lane axis; for extremely wide
    # logits (C so large that even one row-multiple tile exceeds the budget) a
    # C-tiled / online-softmax two-pass variant would be required.
    if block_n is None:
        usable = budget - fixed - 8 * 1024 * 1024
        usable = max(usable, per_row * row_multiple)
        block_n = (usable // per_row) // row_multiple * row_multiple
        # Cap the raw x bytes per step; no benefit past a few MiB of input.
        max_rows = (16 * 1024 * 1024) // max(1, c * itemsize)
        block_n = min(block_n,
                      max(row_multiple, (max_rows // row_multiple) * row_multiple))
    block_n = max(row_multiple, _round_up(int(block_n), row_multiple))
    block_n = min(block_n, _round_up(n, row_multiple))

    grid = _cdiv(n, block_n)
    # v7x megacore: dimension_semantics=("parallel",) only uses both TensorCores
    # if there are >= 2 grid steps to shard.
    if grid == 1 and n >= 4096:
        block_n = _round_up(_cdiv(n, 2), row_multiple)
        grid = _cdiv(n, block_n)
    # Prefer an even number of steps so both cores get equal work.
    if grid > 2 and grid % 2 == 1:
        bn2 = max(row_multiple, _round_up(_cdiv(n, grid + 1), row_multiple))
        if _cdiv(n, bn2) % 2 == 0:
            block_n, grid = bn2, _cdiv(n, bn2)

    y2 = y.astype(jnp.int32).reshape(n, 1)
    if mxu_gather:
        a2 = jnp.broadcast_to(alpha.astype(jnp.float32).reshape(c, 1), (c, 128))
        alpha_spec = pl.BlockSpec((c, 128), lambda i: (0, 0))
    else:
        a2 = alpha.astype(jnp.float32).reshape(1, c)
        alpha_spec = pl.BlockSpec((1, c), lambda i: (0, 0))

    kernel = functools.partial(
        focal_loss_kernel, gamma=gamma, block_n=block_n, n_total=n,
        mxu_gather=mxu_gather,
    )

    cost = pl.CostEstimate(
        flops=int(8 * n * c),
        transcendentals=int(n * (c + 1)),
        bytes_accessed=int(n * c * itemsize + n * 4 + a2.size * 4
                           + grid * 8 * 128 * 4),
    )

    partials = pl.pallas_call(
        kernel,
        out_shape=jax.ShapeDtypeStruct((grid, 8, 128), jnp.float32),
        grid=(grid,),
        in_specs=[
            pl.BlockSpec((block_n, c), lambda i: (i, 0)),   # x tile (native dtype)
            pl.BlockSpec((block_n, 1), lambda i: (i, 0)),   # labels
            alpha_spec,                                     # alpha (resident)
        ],
        out_specs=pl.BlockSpec((1, 8, 128), lambda i: (i, 0, 0)),
        compiler_params=pltpu.CompilerParams(
            dimension_semantics=("parallel",),              # both TCs on v7x
            vmem_limit_bytes=int(budget),
        ),
        cost_estimate=cost,
    )(x, y2, a2)

    num = jnp.sum(partials[:, 0, 0])
    den = jnp.sum(partials[:, 1, 0])
    return -num / den


def focal_loss_ref(x, y, alpha, gamma):
    """Pure-JAX reference mirroring the PyTorch module."""
    log_pt = jax.nn.log_softmax(x.astype(jnp.float32), axis=-1)
    log_pt_y = log_pt[jnp.arange(x.shape[0]), y]
    pt = jnp.exp(log_pt_y)
    focal = (1.0 - pt) ** gamma
    w_y = alpha[y]
    return -jnp.sum(w_y * focal * log_pt_y) / jnp.sum(w_y)


if __name__ == "__main__":
    N, C = 8, 32
    gamma = 2.0

    key = jax.random.PRNGKey(0)
    kx, ky = jax.random.split(key)
    x = jax.random.normal(kx, (N, C), dtype=jnp.float32) * 3.0
    y = jax.random.randint(ky, (N,), 0, C, dtype=jnp.int32)
    # Deterministic per-class "frequency" weights (normalized, strictly positive).
    alpha = jnp.linspace(1.0, 2.0, C, dtype=jnp.float32)
    alpha = alpha / jnp.sum(alpha)

    loss = focal_loss(x, y, alpha=alpha, gamma=gamma)
    loss = jax.block_until_ready(loss)

    ref = focal_loss_ref(x, y, alpha, gamma)
    assert jnp.allclose(loss, ref, rtol=1e-5, atol=1e-5), (loss, ref)

    # TODO(synk): PyTorch NLLLoss ignore_index (default -100) is not handled;
    # out-of-range labels contribute 0 to both num and den here.

    print("KERNEL_OK")
</pallas_src>

<mosaic_0001>
module attributes {stable_mosaic.version = 11 : i64} {
  func.func @focal_loss_kernel(%arg0: i32, %arg1: memref<8x32xf32, #tpu.memory_space<vmem>>, %arg2: memref<8x1xi32, #tpu.memory_space<vmem>>, %arg3: memref<32x128xf32, #tpu.memory_space<vmem>>, %arg4: memref<1x8x128xf32, #tpu.memory_space<vmem>>) attributes {dimension_semantics = [#tpu.dimension_semantics<parallel>], iteration_bounds = array<i64: 1>, scalar_prefetch = 0 : i64, scratch_operands = 0 : i64, tpu.core_type = #tpu.core_type<tc>, window_params = [{transform_indices = @transform_0, window_bounds = array<i64: 8, 32>}, {transform_indices = @transform_1, window_bounds = array<i64: 8, 1>}, {pipeline_mode = #tpu.pipeline_mode<synchronous>, transform_indices = @transform_2, window_bounds = array<i64: 32, 128>}, {transform_indices = @transform_3, window_bounds = array<i64: 1, 8, 128>}]} {
    %c0 = arith.constant 0 : index
    %c0_0 = arith.constant 0 : index
    %0 = vector.load %arg1[%c0, %c0_0] : memref<8x32xf32, #tpu.memory_space<vmem>>, vector<8x32xf32>
    %c0_1 = arith.constant 0 : index
    %c0_2 = arith.constant 0 : index
    %1 = vector.load %arg2[%c0_1, %c0_2] : memref<8x1xi32, #tpu.memory_space<vmem>>, vector<8x1xi32>
    %cst = arith.constant dense<0xFF800000> : vector<8xf32>
    %2 = vector.multi_reduction <maximumf>, %0, %cst [1] : vector<8x32xf32> to vector<8xf32>
    %3 = vector.shape_cast %2 : vector<8xf32> to vector<8x1xf32>
    %4 = vector.broadcast %3 : vector<8x1xf32> to vector<8x32xf32>
    %5 = arith.subf %0, %4 : vector<8x32xf32>
    %6 = math.exp %5 : vector<8x32xf32>
    %cst_3 = arith.constant dense<0.000000e+00> : vector<8xf32>
    %7 = vector.multi_reduction <add>, %6, %cst_3 [1] : vector<8x32xf32> to vector<8xf32>
    %8 = vector.shape_cast %7 : vector<8xf32> to vector<8x1xf32>
    %9 = math.log %8 : vector<8x1xf32>
    %10 = arith.addf %3, %9 : vector<8x1xf32>
    %11 = tpu.iota {dimensions = array<i32: 1>} : vector<8x32xi32>
    %12 = vector.broadcast %1 : vector<8x1xi32> to vector<8x32xi32>
    %13 = arith.cmpi eq, %11, %12 : vector<8x32xi32>
    %cst_4 = arith.constant 0.000000e+00 : f32
    %14 = vector.broadcast %cst_4 : f32 to vector<8x32xf32>
    %15 = arith.select %13, %0, %14 : vector<8x32xi1>, vector<8x32xf32>
    %cst_5 = arith.constant dense<0.000000e+00> : vector<8xf32>
    %16 = vector.multi_reduction <add>, %15, %cst_5 [1] : vector<8x32xf32> to vector<8xf32>
    %17 = vector.shape_cast %16 : vector<8xf32> to vector<8x1xf32>
    %18 = arith.extui %13 : vector<8x32xi1> to vector<8x32xi32>
    %19 = arith.sitofp %18 : vector<8x32xi32> to vector<8x32xf32>
    %c0_6 = arith.constant 0 : index
    %c0_7 = arith.constant 0 : index
    %20 = vector.load %arg3[%c0_6, %c0_7] : memref<32x128xf32, #tpu.memory_space<vmem>>, vector<32x128xf32>
    %cst_8 = arith.constant dense<0.000000e+00> : vector<8x128xf32>
    %21 = tpu.matmul %19, %20, %cst_8 {dimension_numbers = #tpu.dot_dimension_numbers<[1], [0], [0], [1], [0, 0, 1, 1], [], []>, precision = #tpu.contract_precision<fp32>} : vector<8x32xf32>, vector<32x128xf32>, vector<8x128xf32> -> vector<8x128xf32>
    %22 = vector.extract_strided_slice %21 {offsets = [0, 0], sizes = [8, 1], strides = [1, 1]} : vector<8x128xf32> to vector<8x1xf32>
    %23 = arith.subf %17, %10 : vector<8x1xf32>
    %24 = math.exp %23 : vector<8x1xf32>
    %cst_9 = arith.constant 1.000000e+00 : f32
    %25 = vector.broadcast %cst_9 : f32 to vector<8x1xf32>
    %26 = arith.subf %25, %24 : vector<8x1xf32>
    %cst_10 = arith.constant 0.000000e+00 : f32
    %27 = vector.broadcast %cst_10 : f32 to vector<8x1xf32>
    %28 = arith.maximumf %26, %27 : vector<8x1xf32>
    %cst_11 = arith.constant 1.000000e+00 : f32
    %29 = vector.broadcast %cst_11 : f32 to vector<8x1xf32>
    %30 = arith.mulf %28, %28 : vector<8x1xf32>
    %31 = arith.mulf %29, %30 : vector<8x1xf32>
    %c8_i32 = arith.constant 8 : i32
    %32 = arith.muli %arg0, %c8_i32 : i32
    %33 = tpu.iota {dimensions = array<i32: 0>} : vector<8x1xi32>
    %34 = vector.broadcast %32 : i32 to vector<8x1xi32>
    %35 = arith.addi %34, %33 : vector<8x1xi32>
    %c8_i32_12 = arith.constant 8 : i32
    %36 = vector.broadcast %c8_i32_12 : i32 to vector<8x1xi32>
    %37 = arith.cmpi slt, %35, %36 : vector<8x1xi32>
    %38 = arith.mulf %22, %31 : vector<8x1xf32>
    %39 = arith.mulf %38, %23 : vector<8x1xf32>
    %cst_13 = arith.constant 0.000000e+00 : f32
    %40 = vector.broadcast %cst_13 : f32 to vector<8x1xf32>
    %41 = arith.select %37, %39, %40 : vector<8x1xi1>, vector<8x1xf32>
    %42 = vector.shape_cast %41 : vector<8x1xf32> to vector<1x8x1xf32>
    %cst_14 = arith.constant dense<0.000000e+00> : vector<1xf32>
    %43 = vector.multi_reduction <add>, %42, %cst_14 [1, 2] : vector<1x8x1xf32> to vector<1xf32>
    %44 = vector.shape_cast %43 : vector<1xf32> to vector<1x1x1xf32>
    %45 = vector.extract %44[0, 0, 0] : f32 from vector<1x1x1xf32>
    %cst_15 = arith.constant 0.000000e+00 : f32
    %46 = vector.broadcast %cst_15 : f32 to vector<8x1xf32>
    %47 = arith.select %37, %22, %46 : vector<8x1xi1>, vector<8x1xf32>
    %48 = vector.shape_cast %47 : vector<8x1xf32> to vector<1x8x1xf32>
    %cst_16 = arith.constant dense<0.000000e+00> : vector<1xf32>
    %49 = vector.multi_reduction <add>, %48, %cst_16 [1, 2] : vector<1x8x1xf32> to vector<1xf32>
    %50 = vector.shape_cast %49 : vector<1xf32> to vector<1x1x1xf32>
    %51 = vector.extract %50[0, 0, 0] : f32 from vector<1x1x1xf32>
    %52 = tpu.iota {dimensions = array<i32: 1>} : vector<1x8x128xi32>
    %c0_i32 = arith.constant 0 : i32
    %53 = vector.broadcast %c0_i32 : i32 to vector<1x8x128xi32>
    %54 = arith.cmpi eq, %52, %53 : vector<1x8x128xi32>
    %c1_i32 = arith.constant 1 : i32
    %55 = vector.broadcast %c1_i32 : i32 to vector<1x8x128xi32>
    %56 = arith.cmpi eq, %52, %55 : vector<1x8x128xi32>
    %cst_17 = arith.constant 0.000000e+00 : f32
    %57 = vector.broadcast %51 : f32 to vector<1x8x128xf32>
    %58 = vector.broadcast %cst_17 : f32 to vector<1x8x128xf32>
    %59 = arith.select %56, %57, %58 : vector<1x8x128xi1>, vector<1x8x128xf32>
    %60 = vector.broadcast %45 : f32 to vector<1x8x128xf32>
    %61 = arith.select %54, %60, %59 : vector<1x8x128xi1>, vector<1x8x128xf32>
    %c0_18 = arith.constant 0 : index
    %c0_19 = arith.constant 0 : index
    %c0_20 = arith.constant 0 : index
    %62 = vector.load %arg4[%c0_18, %c0_19, %c0_20] : memref<1x8x128xf32, #tpu.memory_space<vmem>>, vector<1x8x128xf32>
    tpu.vector_store %arg4[%c0_18, %c0_19, %c0_20], %61 {strides = array<i32>} : memref<1x8x128xf32, #tpu.memory_space<vmem>>, vector<1x8x128xf32>,
    return
  }
  func.func @transform_0(%arg0: i32) -> (i32, i32) {
    %c0_i32 = arith.constant 0 : i32
    %c0_i32_0 = arith.constant 0 : i32
    return %arg0, %c0_i32 : i32, i32
  }
  func.func @transform_1(%arg0: i32) -> (i32, i32) {
    %c0_i32 = arith.constant 0 : i32
    %c0_i32_0 = arith.constant 0 : i32
    return %arg0, %c0_i32 : i32, i32
  }
  func.func @transform_2(%arg0: i32) -> (i32, i32) {
    %c0_i32 = arith.constant 0 : i32
    %c0_i32_0 = arith.constant 0 : i32
    %c0_i32_1 = arith.constant 0 : i32
    return %c0_i32, %c0_i32_0 : i32, i32
  }
  func.func @transform_3(%arg0: i32) -> (i32, i32, i32) {
    %c0_i32 = arith.constant 0 : i32
    %c0_i32_0 = arith.constant 0 : i32
    %c0_i32_1 = arith.constant 0 : i32
    return %arg0, %c0_i32, %c0_i32_0 : i32, i32, i32
  }
}

</mosaic_0001>

<llo_original>
// kernel: tpu_custom_call.1
$region0: #{tpu_custom_call.1}
  #allocation0 [shape = 'u32[]', space=smem, size = 0x4, offset = 0x4, fixed_abs, tag = 'smem constant byte address 0x4 - core index']
  #allocation1 [shape = 'u32[144,128]{1,0:T(1,128)}', space=vmem, size = 0x12000, scoped, tag = 'internal scratch']
  %s0 = inlined_call_operand.vmem [shape: f32[8,32], index: 0, kind: input, shape index: {}]
  %s1 = inlined_call_operand.vmem [shape: s32[8,1], index: 1, kind: input, shape index: {}]
  %s2 = inlined_call_operand.hbm [shape: f32[32,128], index: 2, kind: input, shape index: {}]
  %s3 = inlined_call_operand.hbm [shape: f32[1,8,128], index: 3, kind: output, shape index: {}]
  %s4 = sld [smem:[#allocation0]]
  $region26: #{tpu_custom_call.1} parent=0
    _
  %s6 = ssub.s32 1, %s4
  %s7 = scalar_select 0, %s6, %s4
  $region1: #{tpu_custom_call.1} parent=0
    #allocation2 [shape = 'u8[16384]{0}', space=vmem, size = 0x4000, scoped, tag = 'input window, operand 2, single buffered']
    #allocation3 [shape = 's32[1]{0}', space=sflag, size = 0x4, scoped, tag = 'scoped memory for tpu_custom_call.1']
    #allocation4 [shape = 's32[1]{0}', space=sflag, size = 0x4, scoped, tag = 'scoped memory for tpu_custom_call.1']
    #allocation5 [shape = 'u8[4096]{0}', space=vmem, size = 0x1000, scoped, tag = 'output window, operand 0, single buffered']
    %8 = vsyncpa [#allocation3], 0
    %9 = vsyncpa [#allocation4], 0
    // Predicated region
    $region2: #{tpu_custom_call.1} parent=1 // pred_check
      _
    $region3: #{tpu_custom_call.1} parent=1 // pred_check_branch
      %11 = sbr.rel (0) target = $region5
    $region4: #{tpu_custom_call.1} parent=1 // pred_region
      _
    $region5: #{tpu_custom_call.1} parent=1 // pred_fallthru
      _
    // Predicated region
    $region6: #{tpu_custom_call.1} parent=1 // pred_check
      _
    $region7: #{tpu_custom_call.1} parent=1 // pred_check_branch
      %13 = sbr.rel (0) target = $region9
    $region8: #{tpu_custom_call.1} parent=1 // pred_region
      _
    $region9: #{tpu_custom_call.1} parent=1 // pred_fallthru
      _
    // Predicated region
    $region10: #{tpu_custom_call.1} parent=1 // pred_check
      _
    $region11: #{tpu_custom_call.1} parent=1 // pred_check_branch
      %15 = sbr.rel (0) target = $region13
    $region12: #{tpu_custom_call.1} parent=1 // pred_region
      %s17 = ssub.s32 512, 512
      %18 = vsyncadd [#allocation3], %s17
      %s19 = sshll.u32 [#allocation2], 4
      %s20 = int_to_ptr.vmem [resolvable:$true] %s19
      %25 = dma.hbm_to_vmem [thread:$0]  %s2, 512, %s20, [#allocation3], 128, 128, 8
    $region13: #{tpu_custom_call.1} parent=1 // pred_fallthru
      _
    // Predicated region
    $region14: #{tpu_custom_call.1} parent=1 // pred_check
      _
    $region15: #{tpu_custom_call.1} parent=1 // pred_check_branch
      %27 = sbr.rel (0) target = $region17
    $region16: #{tpu_custom_call.1} parent=1 // pred_region
      %28 = dma.done [#allocation3], 512
    $region17: #{tpu_custom_call.1} parent=1 // pred_fallthru
      _
    %v29 = vld [vmem:[%s0] sm:$0xff]
    %v30 = vld [vmem:[%s1] sm:$0xff]
    %vm31 = vcmask 261120
    %v32 = vsel %vm31, %v29, -inf
    %33 = vmax.xlane.f32.xlu0 %v32
    %v34 = vpop.xlane.xlu0 %33
    %v35 = vsub.f32 %v29, %v34
    %v36 = vmul.f32 %v35, 1.442695
    %v37 = vpow.pop %v36
    %v38 = vsel %vm31, %v37, 0.0
    %39 = vadd.xlane.f32.xlu0 %v38
    %v40 = vpop.xlane.xlu0 %39
    %v41 = vlog2.pop %v40
    %v42 = vmul.f32 %v41, 0.6931472
    %v43 = vadd.f32 %v34, %v42
    %v44 = vlaneseq
    %v45 = vand.u32 %v44, 127
    %46 = vset.pattern.permute.xlu0 0
    %47 = vperm.xlu0 %46, %v30
    %v48 = vpop.permute.xlu0 %47
    %vm49 = vcmp.eq.s32.totalorder %v45, %v48
    %v50 = vsel %vm49, %v29, 0.0
    %v51 = vsel %vm31, %v50, 0.0
    %52 = vadd.xlane.f32.xlu0 %v51
    %v53 = vpop.xlane.xlu0 %52
    %v54 = vsel %vm49, 1, 0
    %v55 = vcvt.s32.f32 %v54
    %v56 = vld [vmem:[#allocation2] sm:$0xff]
    %v57 = vld [vmem:[#allocation2 + $0x8] sm:$0xff]
    %v58 = vld [vmem:[#allocation2 + $0x10] sm:$0xff]
    %v59 = vld [vmem:[#allocation2 + $0x18] sm:$0xff]
    %v61 = vsel %vm31, %v55, 0
    %63 = vmatprep.subr.mxu0 0.0
    %v64 = vand.u32 %v56, 4294901760
    %65 = vmatpush1.msra.mxu0 %v64
    %66 = vmatprep.subr.mxu0 0.0
    %v67 = vand.u32 %v57, 4294901760
    %68 = vmatpush1.msra.mxu0 %v67
    %69 = vmatprep.subr.mxu0 0.0
    %v70 = vand.u32 %v58, 4294901760
    %71 = vmatpush1.msra.mxu0 %v70
    %72 = vmatprep.subr.mxu0 0.0
    %v73 = vand.u32 %v59, 4294901760
    %74 = vmatpush1.msra.mxu0 %v73
    %75 = vmatprep.subr.mxu0 0.0
    %76 = vmatpush1.msra.mxu0 0.0
    %77 = vmatprep.subr.mxu0 0.0
    %78 = vmatpush1.msra.mxu0 0.0
    %79 = vmatprep.subr.mxu0 0.0
    %80 = vmatpush1.msra.mxu0 0.0
    %81 = vmatprep.subr.mxu0 0.0
    %82 = vmatpush1.msra.mxu0 0.0
    %83 = vmatprep.subr.mxu0 0.0
    %84 = vmatpush1.msra.mxu0 0.0
    %85 = vmatprep.subr.mxu0 0.0
    %86 = vmatpush1.msra.mxu0 0.0
    %87 = vmatprep.subr.mxu0 0.0
    %88 = vmatpush1.msra.mxu0 0.0
    %89 = vmatprep.subr.mxu0 0.0
    %90 = vmatpush1.msra.mxu0 0.0
    %91 = vmatprep.subr.mxu0 0.0
    %92 = vmatpush1.msra.mxu0 0.0
    %93 = vmatprep.subr.mxu0 0.0
    %94 = vmatpush1.msra.mxu0 0.0
    %95 = vmatprep.subr.mxu0 0.0
    %96 = vmatpush1.msra.mxu0 0.0
    %97 = vmatprep.subr.mxu0 0.0
    %98 = vmatpush1.msra.mxu0 0.0
    %99 = vmatprep.subr.mxu0 0.0
    %100 = vmatpush1.msra.mxu0 0.0
    %101 = vmatprep.subr.mxu0 0.0
    %102 = vmatpush1.msra.mxu0 0.0
    %103 = vmatprep.subr.mxu0 0.0
    %104 = vmatpush1.msra.mxu0 0.0
    %105 = vmatprep.subr.mxu0 0.0
    %106 = vmatpush1.msra.mxu0 0.0
    %107 = vmatprep.subr.mxu0 0.0
    %108 = vmatpush1.msra.mxu0 0.0
    %109 = vmatprep.subr.mxu0 0.0
    %110 = vmatpush1.msra.mxu0 0.0
    %111 = vmatprep.subr.mxu0 0.0
    %112 = vmatpush1.msra.mxu0 0.0
    %113 = vmatprep.subr.mxu0 0.0
    %114 = vmatpush1.msra.mxu0 0.0
    %115 = vmatprep.subr.mxu0 0.0
    %116 = vmatpush1.msra.mxu0 0.0
    %117 = vmatprep.subr.mxu0 0.0
    %118 = vmatpush1.msra.mxu0 0.0
    %119 = vmatprep.subr.mxu0 0.0
    %120 = vmatpush1.msra.mxu0 0.0
    %121 = vmatprep.subr.mxu0 0.0
    %122 = vmatpush1.msra.mxu0 0.0
    %123 = vmatprep.subr.mxu0 0.0
    %124 = vmatpush1.msra.mxu0 0.0
    %125 = vmatprep.subr.mxu0 0.0
    %126 = vmatpush1.msra.mxu0 0.0
    %127 = vmatprep.subr.mxu0 0.0
    %128 = vmatpush1.msra.mxu0 0.0
    %129 = vmatprep.subr.mxu0 0.0
    %130 = vmatpush1.msra.mxu0 0.0
    %131 = vmatprep.mubr.f32.mxu0 0.0
    %v132 = vand.u32 %v61, 4294901760
    %v133 = vsub.f32 %v61, %v132
    %v134 = vand.u32 %v133, 4294901760
    %v135 = vsub.f32 %v133, %v134
    %v136 = vand.u32 %v135, 4294901760
    %137 = vmatmul.mubr.f32.gmra.mrb[0].mxu0 %v136
    %v138 = vpop.f32.mrb[0].mxu0
    %v139 = vadd.f32 0.0, %v138
    %v140 = vpop.f32.mrb[0].mxu0
    %141 = vdwg.mxu0
    %142 = vmatprep.subr.mxu0 0.0
    %v143 = vand.u32 %v56, 4294901760
    %v144 = vsub.f32 %v56, %v143
    %v145 = vand.u32 %v144, 4294901760
    %v146 = vsub.f32 %v144, %v145
    %v147 = vand.u32 %v146, 4294901760
    %148 = vmatpush1.msra.mxu0 %v147
    %149 = vmatprep.subr.mxu0 0.0
    %v150 = vand.u32 %v57, 4294901760
    %v151 = vsub.f32 %v57, %v150
    %v152 = vand.u32 %v151, 4294901760
    %v153 = vsub.f32 %v151, %v152
    %v154 = vand.u32 %v153, 4294901760
    %155 = vmatpush1.msra.mxu0 %v154
    %156 = vmatprep.subr.mxu0 0.0
    %v157 = vand.u32 %v58, 4294901760
    %v158 = vsub.f32 %v58, %v157
    %v159 = vand.u32 %v158, 4294901760
    %v160 = vsub.f32 %v158, %v159
    %v161 = vand.u32 %v160, 4294901760
    %162 = vmatpush1.msra.mxu0 %v161
    %163 = vmatprep.subr.mxu0 0.0
    %v164 = vand.u32 %v59, 4294901760
    %v165 = vsub.f32 %v59, %v164
    %v166 = vand.u32 %v165, 4294901760
    %v167 = vsub.f32 %v165, %v166
    %v168 = vand.u32 %v167, 4294901760
    %169 = vmatpush1.msra.mxu0 %v168
    %170 = vmatprep.subr.mxu0 0.0
    %171 = vmatpush1.msra.mxu0 0.0
    %172 = vmatprep.subr.mxu0 0.0
    %173 = vmatpush1.msra.mxu0 0.0
    %174 = vmatprep.subr.mxu0 0.0
    %175 = vmatpush1.msra.mxu0 0.0
    %176 = vmatprep.subr.mxu0 0.0
    %177 = vmatpush1.msra.mxu0 0.0
    %178 = vmatprep.subr.mxu0 0.0
    %179 = vmatpush1.msra.mxu0 0.0
    %180 = vmatprep.subr.mxu0 0.0
    %181 = vmatpush1.msra.mxu0 0.0
    %182 = vmatprep.subr.mxu0 0.0
    %183 = vmatpush1.msra.mxu0 0.0
    %184 = vmatprep.subr.mxu0 0.0
    %185 = vmatpush1.msra.mxu0 0.0
    %186 = vmatprep.subr.mxu0 0.0
    %187 = vmatpush1.msra.mxu0 0.0
    %188 = vmatprep.subr.mxu0 0.0
    %189 = vmatpush1.msra.mxu0 0.0
    %190 = vmatprep.subr.mxu0 0.0
    %191 = vmatpush1.msra.mxu0 0.0
    %192 = vmatprep.subr.mxu0 0.0
    %193 = vmatpush1.msra.mxu0 0.0
    %194 = vmatprep.subr.mxu0 0.0
    %195 = vmatpush1.msra.mxu0 0.0
    %196 = vmatprep.subr.mxu0 0.0
    %197 = vmatpush1.msra.mxu0 0.0
    %198 = vmatprep.subr.mxu0 0.0
    %199 = vmatpush1.msra.mxu0 0.0
    %200 = vmatprep.subr.mxu0 0.0
    %201 = vmatpush1.msra.mxu0 0.0
    %202 = vmatprep.subr.mxu0 0.0
    %203 = vmatpush1.msra.mxu0 0.0
    %204 = vmatprep.subr.mxu0 0.0
    %205 = vmatpush1.msra.mxu0 0.0
    %206 = vmatprep.subr.mxu0 0.0
    %207 = vmatpush1.msra.mxu0 0.0
    %208 = vmatprep.subr.mxu0 0.0
    %209 = vmatpush1.msra.mxu0 0.0
    %210 = vmatprep.subr.mxu0 0.0
    %211 = vmatpush1.msra.mxu0 0.0
    %212 = vmatprep.subr.mxu0 0.0
    %213 = vmatpush1.msra.mxu0 0.0
    %214 = vmatprep.subr.mxu0 0.0
    %215 = vmatpush1.msra.mxu0 0.0
    %216 = vmatprep.subr.mxu0 0.0
    %217 = vmatpush1.msra.mxu0 0.0
    %218 = vmatprep.subr.mxu0 0.0
    %219 = vmatpush1.msra.mxu0 0.0
    %220 = vmatprep.subr.mxu0 0.0
    %221 = vmatpush1.msra.mxu0 0.0
    %222 = vmatprep.subr.mxu0 0.0
    %223 = vmatpush1.msra.mxu0 0.0
    %224 = vmatprep.subr.mxu0 0.0
    %225 = vmatpush1.msra.mxu0 0.0
    %226 = vmatprep.mubr.f32.mxu0 0.0
    %v227 = vand.u32 %v61, 4294901760
    %228 = vmatmul.mubr.f32.gmra.mrb[0].mxu0 %v227
    %v229 = vpop.f32.mrb[0].mxu0
    %v230 = vadd.f32 %v139, %v229
    %v231 = vpop.f32.mrb[0].mxu0
    %232 = vdwg.mxu0
    %233 = vmatprep.subr.mxu0 0.0
    %v234 = vand.u32 %v56, 4294901760
    %v235 = vsub.f32 %v56, %v234
    %236 = vmatpush1.msra.mxu0 %v235
    %237 = vmatprep.subr.mxu0 0.0
    %v238 = vand.u32 %v57, 4294901760
    %v239 = vsub.f32 %v57, %v238
    %240 = vmatpush1.msra.mxu0 %v239
    %241 = vmatprep.subr.mxu0 0.0
    %v242 = vand.u32 %v58, 4294901760
    %v243 = vsub.f32 %v58, %v242
    %244 = vmatpush1.msra.mxu0 %v243
    %245 = vmatprep.subr.mxu0 0.0
    %v246 = vand.u32 %v59, 4294901760
    %v247 = vsub.f32 %v59, %v246
    %248 = vmatpush1.msra.mxu0 %v247
    %249 = vmatprep.subr.mxu0 0.0
    %250 = vmatpush1.msra.mxu0 0.0
    %251 = vmatprep.subr.mxu0 0.0
    %252 = vmatpush1.msra.mxu0 0.0
    %253 = vmatprep.subr.mxu0 0.0
    %254 = vmatpush1.msra.mxu0 0.0
    %255 = vmatprep.subr.mxu0 0.0
    %256 = vmatpush1.msra.mxu0 0.0
    %257 = vmatprep.subr.mxu0 0.0
    %258 = vmatpush1.msra.mxu0 0.0
    %259 = vmatprep.subr.mxu0 0.0
    %260 = vmatpush1.msra.mxu0 0.0
    %261 = vmatprep.subr.mxu0 0.0
    %262 = vmatpush1.msra.mxu0 0.0
    %263 = vmatprep.subr.mxu0 0.0
    %264 = vmatpush1.msra.mxu0 0.0
    %265 = vmatprep.subr.mxu0 0.0
    %266 = vmatpush1.msra.mxu0 0.0
    %267 = vmatprep.subr.mxu0 0.0
    %268 = vmatpush1.msra.mxu0 0.0
    %269 = vmatprep.subr.mxu0 0.0
    %270 = vmatpush1.msra.mxu0 0.0
    %271 = vmatprep.subr.mxu0 0.0
    %272 = vmatpush1.msra.mxu0 0.0
    %273 = vmatprep.subr.mxu0 0.0
    %274 = vmatpush1.msra.mxu0 0.0
    %275 = vmatprep.subr.mxu0 0.0
    %276 = vmatpush1.msra.mxu0 0.0
    %277 = vmatprep.subr.mxu0 0.0
    %278 = vmatpush1.msra.mxu0 0.0
    %279 = vmatprep.subr.mxu0 0.0
    %280 = vmatpush1.msra.mxu0 0.0
    %281 = vmatprep.subr.mxu0 0.0
    %282 = vmatpush1.msra.mxu0 0.0
    %283 = vmatprep.subr.mxu0 0.0
    %284 = vmatpush1.msra.mxu0 0.0
    %285 = vmatprep.subr.mxu0 0.0
    %286 = vmatpush1.msra.mxu0 0.0
    %287 = vmatprep.subr.mxu0 0.0
    %288 = vmatpush1.msra.mxu0 0.0
    %289 = vmatprep.subr.mxu0 0.0
    %290 = vmatpush1.msra.mxu0 0.0
    %291 = vmatprep.subr.mxu0 0.0
    %292 = vmatpush1.msra.mxu0 0.0
    %293 = vmatprep.subr.mxu0 0.0
    %294 = vmatpush1.msra.mxu0 0.0
    %295 = vmatprep.subr.mxu0 0.0
    %296 = vmatpush1.msra.mxu0 0.0
    %297 = vmatprep.subr.mxu0 0.0
    %298 = vmatpush1.msra.mxu0 0.0
    %299 = vmatprep.subr.mxu0 0.0
    %300 = vmatpush1.msra.mxu0 0.0
    %301 = vmatprep.subr.mxu0 0.0
    %302 = vmatpush1.msra.mxu0 0.0
    %303 = vmatprep.subr.mxu0 0.0
    %304 = vmatpush1.msra.mxu0 0.0
    %305 = vmatprep.mubr.f32.mxu0 0.0
    %v306 = vand.u32 %v61, 4294901760
    %v307 = vsub.f32 %v61, %v306
    %308 = vmatmul.mubr.f32.gmra.mrb[0].mxu0 %v307
    %v309 = vpop.f32.mrb[0].mxu0
    %v310 = vadd.f32 %v230, %v309
    %v311 = vpop.f32.mrb[0].mxu0
    %312 = vdwg.mxu0
    %313 = vmatprep.subr.mxu0 0.0
    %v314 = vand.u32 %v56, 4294901760
    %315 = vmatpush1.msra.mxu0 %v314
    %316 = vmatprep.subr.mxu0 0.0
    %v317 = vand.u32 %v57, 4294901760
    %318 = vmatpush1.msra.mxu0 %v317
    %319 = vmatprep.subr.mxu0 0.0
    %v320 = vand.u32 %v58, 4294901760
    %321 = vmatpush1.msra.mxu0 %v320
    %322 = vmatprep.subr.mxu0 0.0
    %v323 = vand.u32 %v59, 4294901760
    %324 = vmatpush1.msra.mxu0 %v323
    %325 = vmatprep.subr.mxu0 0.0
    %326 = vmatpush1.msra.mxu0 0.0
    %327 = vmatprep.subr.mxu0 0.0
    %328 = vmatpush1.msra.mxu0 0.0
    %329 = vmatprep.subr.mxu0 0.0
    %330 = vmatpush1.msra.mxu0 0.0
    %331 = vmatprep.subr.mxu0 0.0
    %332 = vmatpush1.msra.mxu0 0.0
    %333 = vmatprep.subr.mxu0 0.0
    %334 = vmatpush1.msra.mxu0 0.0
    %335 = vmatprep.subr.mxu0 0.0
    %336 = vmatpush1.msra.mxu0 0.0
    %337 = vmatprep.subr.mxu0 0.0
    %338 = vmatpush1.msra.mxu0 0.0
    %339 = vmatprep.subr.mxu0 0.0
    %340 = vmatpush1.msra.mxu0 0.0
    %341 = vmatprep.subr.mxu0 0.0
    %342 = vmatpush1.msra.mxu0 0.0
    %343 = vmatprep.subr.mxu0 0.0
    %344 = vmatpush1.msra.mxu0 0.0
    %345 = vmatprep.subr.mxu0 0.0
    %346 = vmatpush1.msra.mxu0 0.0
    %347 = vmatprep.subr.mxu0 0.0
    %348 = vmatpush1.msra.mxu0 0.0
    %349 = vmatprep.subr.mxu0 0.0
    %350 = vmatpush1.msra.mxu0 0.0
    %351 = vmatprep.subr.mxu0 0.0
    %352 = vmatpush1.msra.mxu0 0.0
    %353 = vmatprep.subr.mxu0 0.0
    %354 = vmatpush1.msra.mxu0 0.0
    %355 = vmatprep.subr.mxu0 0.0
    %356 = vmatpush1.msra.mxu0 0.0
    %357 = vmatprep.subr.mxu0 0.0
    %358 = vmatpush1.msra.mxu0 0.0
    %359 = vmatprep.subr.mxu0 0.0
    %360 = vmatpush1.msra.mxu0 0.0
    %361 = vmatprep.subr.mxu0 0.0
    %362 = vmatpush1.msra.mxu0 0.0
    %363 = vmatprep.subr.mxu0 0.0
    %364 = vmatpush1.msra.mxu0 0.0
    %365 = vmatprep.subr.mxu0 0.0
    %366 = vmatpush1.msra.mxu0 0.0
    %367 = vmatprep.subr.mxu0 0.0
    %368 = vmatpush1.msra.mxu0 0.0
    %369 = vmatprep.subr.mxu0 0.0
    %370 = vmatpush1.msra.mxu0 0.0
    %371 = vmatprep.subr.mxu0 0.0
    %372 = vmatpush1.msra.mxu0 0.0
    %373 = vmatprep.subr.mxu0 0.0
    %374 = vmatpush1.msra.mxu0 0.0
    %375 = vmatprep.subr.mxu0 0.0
    %376 = vmatpush1.msra.mxu0 0.0
    %377 = vmatprep.subr.mxu0 0.0
    %378 = vmatpush1.msra.mxu0 0.0
    %379 = vmatprep.subr.mxu0 0.0
    %380 = vmatpush1.msra.mxu0 0.0
    %381 = vmatprep.mubr.f32.mxu0 0.0
    %v382 = vand.u32 %v61, 4294901760
    %v383 = vsub.f32 %v61, %v382
    %v384 = vand.u32 %v383, 4294901760
    %385 = vmatmul.mubr.f32.gmra.mrb[0].mxu0 %v384
    %v386 = vpop.f32.mrb[0].mxu0
    %v387 = vadd.f32 %v310, %v386
    %v388 = vpop.f32.mrb[0].mxu0
    %389 = vdwg.mxu0
    %390 = vmatprep.subr.mxu0 0.0
    %v391 = vand.u32 %v56, 4294901760
    %v392 = vsub.f32 %v56, %v391
    %v393 = vand.u32 %v392, 4294901760
    %394 = vmatpush1.msra.mxu0 %v393
    %395 = vmatprep.subr.mxu0 0.0
    %v396 = vand.u32 %v57, 4294901760
    %v397 = vsub.f32 %v57, %v396
    %v398 = vand.u32 %v397, 4294901760
    %399 = vmatpush1.msra.mxu0 %v398
    %400 = vmatprep.subr.mxu0 0.0
    %v401 = vand.u32 %v58, 4294901760
    %v402 = vsub.f32 %v58, %v401
    %v403 = vand.u32 %v402, 4294901760
    %404 = vmatpush1.msra.mxu0 %v403
    %405 = vmatprep.subr.mxu0 0.0
    %v406 = vand.u32 %v59, 4294901760
    %v407 = vsub.f32 %v59, %v406
    %v408 = vand.u32 %v407, 4294901760
    %409 = vmatpush1.msra.mxu0 %v408
    %410 = vmatprep.subr.mxu0 0.0
    %411 = vmatpush1.msra.mxu0 0.0
    %412 = vmatprep.subr.mxu0 0.0
    %413 = vmatpush1.msra.mxu0 0.0
    %414 = vmatprep.subr.mxu0 0.0
    %415 = vmatpush1.msra.mxu0 0.0
    %416 = vmatprep.subr.mxu0 0.0
    %417 = vmatpush1.msra.mxu0 0.0
    %418 = vmatprep.subr.mxu0 0.0
    %419 = vmatpush1.msra.mxu0 0.0
    %420 = vmatprep.subr.mxu0 0.0
    %421 = vmatpush1.msra.mxu0 0.0
    %422 = vmatprep.subr.mxu0 0.0
    %423 = vmatpush1.msra.mxu0 0.0
    %424 = vmatprep.subr.mxu0 0.0
    %425 = vmatpush1.msra.mxu0 0.0
    %426 = vmatprep.subr.mxu0 0.0
    %427 = vmatpush1.msra.mxu0 0.0
    %428 = vmatprep.subr.mxu0 0.0
    %429 = vmatpush1.msra.mxu0 0.0
    %430 = vmatprep.subr.mxu0 0.0
    %431 = vmatpush1.msra.mxu0 0.0
    %432 = vmatprep.subr.mxu0 0.0
    %433 = vmatpush1.msra.mxu0 0.0
    %434 = vmatprep.subr.mxu0 0.0
    %435 = vmatpush1.msra.mxu0 0.0
    %436 = vmatprep.subr.mxu0 0.0
    %437 = vmatpush1.msra.mxu0 0.0
    %438 = vmatprep.subr.mxu0 0.0
    %439 = vmatpush1.msra.mxu0 0.0
    %440 = vmatprep.subr.mxu0 0.0
    %441 = vmatpush1.msra.mxu0 0.0
    %442 = vmatprep.subr.mxu0 0.0
    %443 = vmatpush1.msra.mxu0 0.0
    %444 = vmatprep.subr.mxu0 0.0
    %445 = vmatpush1.msra.mxu0 0.0
    %446 = vmatprep.subr.mxu0 0.0
    %447 = vmatpush1.msra.mxu0 0.0
    %448 = vmatprep.subr.mxu0 0.0
    %449 = vmatpush1.msra.mxu0 0.0
    %450 = vmatprep.subr.mxu0 0.0
    %451 = vmatpush1.msra.mxu0 0.0
    %452 = vmatprep.subr.mxu0 0.0
    %453 = vmatpush1.msra.mxu0 0.0
    %454 = vmatprep.subr.mxu0 0.0
    %455 = vmatpush1.msra.mxu0 0.0
    %456 = vmatprep.subr.mxu0 0.0
    %457 = vmatpush1.msra.mxu0 0.0
    %458 = vmatprep.subr.mxu0 0.0
    %459 = vmatpush1.msra.mxu0 0.0
    %460 = vmatprep.subr.mxu0 0.0
    %461 = vmatpush1.msra.mxu0 0.0
    %462 = vmatprep.subr.mxu0 0.0
    %463 = vmatpush1.msra.mxu0 0.0
    %464 = vmatprep.subr.mxu0 0.0
    %465 = vmatpush1.msra.mxu0 0.0
    %466 = vmatprep.mubr.f32.mxu0 0.0
    %v467 = vand.u32 %v61, 4294901760
    %468 = vmatmul.mubr.f32.gmra.mrb[0].mxu0 %v467
    %v469 = vpop.f32.mrb[0].mxu0
    %v470 = vadd.f32 %v387, %v469
    %v471 = vpop.f32.mrb[0].mxu0
    %472 = vdwg.mxu0
    %473 = vmatprep.subr.mxu0 0.0
    %v474 = vand.u32 %v56, 4294901760
    %475 = vmatpush1.msra.mxu0 %v474
    %476 = vmatprep.subr.mxu0 0.0
    %v477 = vand.u32 %v57, 4294901760
    %478 = vmatpush1.msra.mxu0 %v477
    %479 = vmatprep.subr.mxu0 0.0
    %v480 = vand.u32 %v58, 4294901760
    %481 = vmatpush1.msra.mxu0 %v480
    %482 = vmatprep.subr.mxu0 0.0
    %v483 = vand.u32 %v59, 4294901760
    %484 = vmatpush1.msra.mxu0 %v483
    %485 = vmatprep.subr.mxu0 0.0
    %486 = vmatpush1.msra.mxu0 0.0
    %487 = vmatprep.subr.mxu0 0.0
    %488 = vmatpush1.msra.mxu0 0.0
    %489 = vmatprep.subr.mxu0 0.0
    %490 = vmatpush1.msra.mxu0 0.0
    %491 = vmatprep.subr.mxu0 0.0
    %492 = vmatpush1.msra.mxu0 0.0
    %493 = vmatprep.subr.mxu0 0.0
    %494 = vmatpush1.msra.mxu0 0.0
    %495 = vmatprep.subr.mxu0 0.0
    %496 = vmatpush1.msra.mxu0 0.0
    %497 = vmatprep.subr.mxu0 0.0
    %498 = vmatpush1.msra.mxu0 0.0
    %499 = vmatprep.subr.mxu0 0.0
    %500 = vmatpush1.msra.mxu0 0.0
    %501 = vmatprep.subr.mxu0 0.0
    %502 = vmatpush1.msra.mxu0 0.0
    %503 = vmatprep.subr.mxu0 0.0
    %504 = vmatpush1.msra.mxu0 0.0
    %505 = vmatprep.subr.mxu0 0.0
    %506 = vmatpush1.msra.mxu0 0.0
    %507 = vmatprep.subr.mxu0 0.0
    %508 = vmatpush1.msra.mxu0 0.0
    %509 = vmatprep.subr.mxu0 0.0
    %510 = vmatpush1.msra.mxu0 0.0
    %511 = vmatprep.subr.mxu0 0.0
    %512 = vmatpush1.msra.mxu0 0.0
    %513 = vmatprep.subr.mxu0 0.0
    %514 = vmatpush1.msra.mxu0 0.0
    %515 = vmatprep.subr.mxu0 0.0
    %516 = vmatpush1.msra.mxu0 0.0
    %517 = vmatprep.subr.mxu0 0.0
    %518 = vmatpush1.msra.mxu0 0.0
    %519 = vmatprep.subr.mxu0 0.0
    %520 = vmatpush1.msra.mxu0 0.0
    %521 = vmatprep.subr.mxu0 0.0
    %522 = vmatpush1.msra.mxu0 0.0
    %523 = vmatprep.subr.mxu0 0.0
    %524 = vmatpush1.msra.mxu0 0.0
    %525 = vmatprep.subr.mxu0 0.0
    %526 = vmatpush1.msra.mxu0 0.0
    %527 = vmatprep.subr.mxu0 0.0
    %528 = vmatpush1.msra.mxu0 0.0
    %529 = vmatprep.subr.mxu0 0.0
    %530 = vmatpush1.msra.mxu0 0.0
    %531 = vmatprep.subr.mxu0 0.0
    %532 = vmatpush1.msra.mxu0 0.0
    %533 = vmatprep.subr.mxu0 0.0
    %534 = vmatpush1.msra.mxu0 0.0
    %535 = vmatprep.subr.mxu0 0.0
    %536 = vmatpush1.msra.mxu0 0.0
    %537 = vmatprep.subr.mxu0 0.0
    %538 = vmatpush1.msra.mxu0 0.0
    %539 = vmatprep.subr.mxu0 0.0
    %540 = vmatpush1.msra.mxu0 0.0
    %541 = vmatprep.mubr.f32.mxu0 0.0
    %v542 = vand.u32 %v61, 4294901760
    %543 = vmatmul.mubr.f32.gmra.mrb[0].mxu0 %v542
    %v544 = vpop.f32.mrb[0].mxu0
    %v545 = vadd.f32 %v470, %v544
    %v546 = vpop.f32.mrb[0].mxu0
    %547 = vdwg.mxu0
    %v548 = vsub.f32 %v53, %v43
    %v549 = vmul.f32 %v548, 1.442695
    %v550 = vpow.pop %v549
    %v551 = vsub.f32 1.0, %v550
    %v552 = vmax.f32 %v551, 0.0
    %v553 = vmul.f32 %v552, %v552
    %s554 = smul.u32 0, 8
    %v555 = vlaneseq
    %v556 = vshrl.u32 %v555, 7
    %v557 = vstv %s554
    %v558 = vadd.s32 %v557, %v556
    %vm559 = vcmp.lt.s32.totalorder %v558, 8
    %v560 = vmul.f32 %v545, %v553
    %v561 = vmul.f32 %v560, %v548
    %v562 = vsel %vm559, %v561, 0.0
    %vm563 = vcmask 7168
    %v564 = vsel %vm563, %v562, 0.0
    %565 = vadd.xlane.f32.xlu0 %v564
    %v566 = vpop.xlane.xlu0 %565
    %v567 = vrot.slane %v566, 4
    %v568 = vadd.f32 %v566, %v567
    %v569 = vrot.slane %v568, 2
    %v570 = vadd.f32 %v568, %v569
    %v571 = vrot.slane %v570, 1
    %v572 = vadd.f32 %v570, %v571
    %s573 = vtos %v572
    %v574 = vsel %vm559, %v545, 0.0
    %v575 = vsel %vm563, %v574, 0.0
    %576 = vadd.xlane.f32.xlu0 %v575
    %v577 = vpop.xlane.xlu0 %576
    %v578 = vrot.slane %v577, 4
    %v579 = vadd.f32 %v577, %v578
    %v580 = vrot.slane %v579, 2
    %v581 = vadd.f32 %v579, %v580
    %v582 = vrot.slane %v581, 1
    %v583 = vadd.f32 %v581, %v582
    %s584 = vtos %v583
    %vm585 = vcmp.eq.s32.totalorder %v556, 0
    %vm586 = vcmp.eq.s32.totalorder %v556, 1
    %v587 = vstv %s584
    %v588 = vsel %vm586, %v587, 0.0
    %v589 = vstv %s573
    %v590 = vsel %vm585, %v589, %v588
    %591 = vst [vmem:[#allocation5] sm:$0xff] %v590
    // Predicated region
    $region18: #{tpu_custom_call.1} parent=1 // pred_check
      _
    $region19: #{tpu_custom_call.1} parent=1 // pred_check_branch
      %593 = sbr.rel (0) target = $region21
    $region20: #{tpu_custom_call.1} parent=1 // pred_region
      %s595 = ssub.s32 128, 128
      %596 = vsyncadd [#allocation4], %s595
      %s598 = sshll.u32 [#allocation5], 4
      %s599 = int_to_ptr.vmem [resolvable:$true] %s598
      %601 = dma.vmem_to_hbm [thread:$0]  %s599, 128, %s3, [#allocation4]
    $region21: #{tpu_custom_call.1} parent=1 // pred_fallthru
      _
    // Predicated region
    $region22: #{tpu_custom_call.1} parent=1 // pred_check
      _
    $region23: #{tpu_custom_call.1} parent=1 // pred_check_branch
      %603 = sbr.rel (0) target = $region25
    $region24: #{tpu_custom_call.1} parent=1 // pred_region
      %604 = dma.done [#allocation4], 128
    $region25: #{tpu_custom_call.1} parent=1 // pred_fallthru
      _
    %605 = vsyncpa [#allocation3], 1
    %606 = vsyncpa [#allocation4], 1

</llo_original>
